<compile_context>
chip_gen: v5e
topology: v5e:2x2
jax: 0.10.0
libtpu: 0.0.40
codegen_flags: <defaults>
</compile_context>

<pallas_src>
import functools

import jax
import jax.numpy as jnp
from jax.experimental import pallas as pl
from jax.experimental.pallas import tpu as pltpu


_LANES = 128  # slab / output lane width (>= hidden and >= projection_ndim)


# ---------------------------------------------------------------------------
# Fused Pallas kernel
# ---------------------------------------------------------------------------

def _emb_fused_kernel(x_ref, w_ref, b_ref, pos_ref, neg_ref, o_ref, *, B, F, W, H, Kt):
    """Fused EmbModel forward.

    x:    [B*F, W]       framed waveform
    w:    [W+H+Kt, 128]  weight slab: rows [0:W]=audio_w1, [W:W+H]=audio_w2,
                         [W+H:]=text_w (columns zero-padded to 128 lanes)
    b:    [3, 128]       bias pack: rows = (audio_b1, audio_b2, text_b)
    pos:  [B, Kt]        pos_repr
    neg:  [B, Kt]        neg_repr
    o:    [R, 128]       R = 3B rounded up to 8; rows [0:B]=audio_emb,
                         [B:3B]=pos/neg projections, rest zero pad.
    """
    Dp = o_ref.shape[1]
    R = o_ref.shape[0]

    # Static ref views into the packed operands (zero-cost).
    w1 = w_ref[0:W, :]                     # [W, H]   (H == 128 lanes)
    w2 = w_ref[W:W + H, :]                 # [H, Dp]
    tw = w_ref[W + H:W + H + Kt, :]        # [Kt, Dp]
    b1 = b_ref[0:1, :]
    b2 = b_ref[1:2, :]
    tb = b_ref[2:3, :]

    # ---- audio path: frame Linear -> ReLU --------------------------------
    h = jnp.dot(x_ref[...], w1, preferred_element_type=jnp.float32)
    h = jnp.maximum(h + b1, 0.0)                                   # [B*F, H]

    # ---- frame mean: sublane-aligned reshape + XLU sum, 1/F folded --------
    m = h.reshape(B, F, H).sum(axis=1) * jnp.float32(1.0 / F)      # [B, H]

    # ---- audio output Linear ----------------------------------------------
    audio = jnp.dot(m, w2, preferred_element_type=jnp.float32) + b2  # [B, Dp]

    # ---- text path: stack pos/neg in-register, single GEMM ----------------
    t = jnp.concatenate([pos_ref[...], neg_ref[...]], axis=0)        # [2B, Kt]
    text = jnp.dot(t, tw, preferred_element_type=jnp.float32) + tb   # [2B, Dp]

    # ---- single unmasked full-tile store -----------------------------------
    pieces = [audio, text]
    pad_rows = R - 3 * B
    if pad_rows:
        pieces.append(jnp.zeros((pad_rows, Dp), jnp.float32))
    o_ref[...] = jnp.concatenate(pieces, axis=0).astype(o_ref.dtype)


_VMEM = pl.BlockSpec(memory_space=pltpu.MemorySpace.VMEM)


# ---------------------------------------------------------------------------
# EmbModel forward (single jit, single pallas_call)
# ---------------------------------------------------------------------------

@functools.partial(jax.jit, static_argnames=("frame_len", "projection_ndim"))
def emb_model_forward(params, waveforms, pos_repr, neg_repr, *,
                      frame_len, projection_ndim):
    """Mirrors EmbModel.forward: returns (audio_emb, pos_emb, neg_emb)."""
    B, T = waveforms.shape
    F = T // frame_len
    x = waveforms[:, : F * frame_len].reshape(B * F, frame_len)

    w_slab = params["w_slab"]
    bias = params["bias"]
    W = frame_len
    H = _LANES
    Kt = w_slab.shape[0] - W - H           # text feature dim (300)
    Dp = w_slab.shape[1]                   # lane-padded output width (128)
    R = max(8, ((3 * B + 7) // 8) * 8)     # output rows padded to a full (8,128) tile

    flops = 2 * (B * F * W * H + B * H * Dp + 2 * B * Kt * Dp)
    bytes_accessed = 4 * (x.size + w_slab.size + bias.size +
                          pos_repr.size + neg_repr.size + R * Dp)

    out = pl.pallas_call(
        functools.partial(_emb_fused_kernel, B=B, F=F, W=W, H=H, Kt=Kt),
        out_shape=jax.ShapeDtypeStruct((R, Dp), jnp.float32),
        in_specs=[_VMEM] * 5,
        out_specs=_VMEM,
        cost_estimate=pl.CostEstimate(flops=flops, transcendentals=0,
                                      bytes_accessed=bytes_accessed),
    )(x, w_slab, bias, pos_repr, neg_repr)

    # One column+row slice, then split into the three module outputs.
    emb = out[:3 * B, :projection_ndim]
    audio_emb, pos_emb, neg_emb = jnp.split(emb, 3, axis=0)
    return audio_emb, pos_emb, neg_emb


# ---------------------------------------------------------------------------
# Deterministic parameter init (weights stacked into one lane-padded slab)
# ---------------------------------------------------------------------------

def init_params(key, projection_ndim=32, frame_len=128, hidden=128, text_dim=300):
    assert hidden == _LANES, "stand-in audio hidden width must equal slab lane width"
    assert projection_ndim <= _LANES
    ks = jax.random.split(key, 6)
    scale = lambda fan_in: 1.0 / jnp.sqrt(jnp.float32(fan_in))

    audio_w1 = jax.random.normal(ks[0], (frame_len, hidden), jnp.float32) * scale(frame_len)
    audio_b1 = jax.random.normal(ks[1], (1, hidden), jnp.float32) * 0.01
    audio_w2 = jax.random.normal(ks[2], (hidden, projection_ndim), jnp.float32) * scale(hidden)
    audio_b2 = jax.random.normal(ks[3], (1, projection_ndim), jnp.float32) * 0.01
    text_w = jax.random.normal(ks[4], (text_dim, projection_ndim), jnp.float32) * scale(text_dim)
    text_b = jax.random.normal(ks[5], (1, projection_ndim), jnp.float32) * 0.01

    pad_cols = lambda a: jnp.pad(a, ((0, 0), (0, _LANES - a.shape[-1])))
    # Weight slab: [frame_len + hidden + text_dim, 128]
    w_slab = jnp.concatenate([audio_w1, pad_cols(audio_w2), pad_cols(text_w)], axis=0)
    # Bias pack: [3, 128] = (audio_b1, audio_b2, text_b)
    bias = jnp.concatenate([audio_b1, pad_cols(audio_b2), pad_cols(text_b)], axis=0)
    return {"w_slab": w_slab, "bias": bias}


# ---------------------------------------------------------------------------
# Main
# ---------------------------------------------------------------------------

if __name__ == "__main__":
    key = jax.random.PRNGKey(0)
    k_params, k_wave, k_pos, k_neg = jax.random.split(key, 4)

    B = 2
    T = 1024                 # waveform length (framed into 8 x 128)
    frame_len = 128
    projection_ndim = 32

    params = init_params(k_params, projection_ndim=projection_ndim, frame_len=frame_len)

    waveforms = jax.random.normal(k_wave, (B, T), jnp.float32)
    pos_repr = jax.random.normal(k_pos, (B, 300), jnp.float32)
    neg_repr = jax.random.normal(k_neg, (B, 300), jnp.float32)

    audio_emb, pos_emb, neg_emb = emb_model_forward(
        params, waveforms, pos_repr, neg_repr,
        frame_len=frame_len, projection_ndim=projection_ndim)
    jax.block_until_ready((audio_emb, pos_emb, neg_emb))

    # Reference check against plain JAX (unpack the packed params).
    W, H, D = frame_len, _LANES, projection_ndim
    w1 = params["w_slab"][:W]
    w2 = params["w_slab"][W:W + H, :D]
    tw = params["w_slab"][W + H:, :D]
    b1 = params["bias"][0:1]
    b2 = params["bias"][1:2, :D]
    tb = params["bias"][2:3, :D]

    F = T // frame_len
    x_framed = waveforms[:, : F * frame_len].reshape(B, F, frame_len)
    h = jnp.maximum(x_framed @ w1 + b1, 0.0)
    audio_ref = jnp.mean(h, axis=1) @ w2 + b2
    pos_ref = pos_repr @ tw + tb
    neg_ref = neg_repr @ tw + tb

    assert audio_emb.shape == (B, projection_ndim)
    assert pos_emb.shape == (B, projection_ndim)
    assert neg_emb.shape == (B, projection_ndim)
    assert jnp.allclose(audio_emb, audio_ref, atol=1e-4)
    assert jnp.allclose(pos_emb, pos_ref, atol=1e-4)
    assert jnp.allclose(neg_emb, neg_ref, atol=1e-4)

    print("KERNEL_OK")
</pallas_src>

<mosaic_0001>
module attributes {stable_mosaic.version = 11 : i64} {
  func.func @_emb_fused_kernel(%arg0: memref<16x128xf32, #tpu.memory_space<vmem>>, %arg1: memref<556x128xf32, #tpu.memory_space<vmem>>, %arg2: memref<3x128xf32, #tpu.memory_space<vmem>>, %arg3: memref<2x300xf32, #tpu.memory_space<vmem>>, %arg4: memref<2x300xf32, #tpu.memory_space<vmem>>, %arg5: memref<8x128xf32, #tpu.memory_space<vmem>>) attributes {dimension_semantics = [], scalar_prefetch = 0 : i64, scratch_operands = 0 : i64, tpu.core_type = #tpu.core_type<tc>} {
    %c0 = arith.constant 0 : index
    %c0_0 = arith.constant 0 : index
    %0 = vector.load %arg1[%c0, %c0_0] : memref<556x128xf32, #tpu.memory_space<vmem>>, vector<128x128xf32>
    %c128 = arith.constant 128 : index
    %c0_1 = arith.constant 0 : index
    %1 = vector.load %arg1[%c128, %c0_1] : memref<556x128xf32, #tpu.memory_space<vmem>>, vector<128x128xf32>
    %c256 = arith.constant 256 : index
    %c0_2 = arith.constant 0 : index
    %2 = vector.load %arg1[%c256, %c0_2] : memref<556x128xf32, #tpu.memory_space<vmem>>, vector<300x128xf32>
    %c0_3 = arith.constant 0 : index
    %c0_4 = arith.constant 0 : index
    %3 = vector.load %arg2[%c0_3, %c0_4] : memref<3x128xf32, #tpu.memory_space<vmem>>, vector<1x128xf32>
    %c1 = arith.constant 1 : index
    %c0_5 = arith.constant 0 : index
    %4 = vector.load %arg2[%c1, %c0_5] : memref<3x128xf32, #tpu.memory_space<vmem>>, vector<1x128xf32>
    %c2 = arith.constant 2 : index
    %c0_6 = arith.constant 0 : index
    %5 = vector.load %arg2[%c2, %c0_6] : memref<3x128xf32, #tpu.memory_space<vmem>>, vector<1x128xf32>
    %c0_7 = arith.constant 0 : index
    %c0_8 = arith.constant 0 : index
    %6 = vector.load %arg0[%c0_7, %c0_8] : memref<16x128xf32, #tpu.memory_space<vmem>>, vector<16x128xf32>
    %cst = arith.constant dense<0.000000e+00> : vector<16x128xf32>
    %7 = tpu.matmul %6, %0, %cst {dimension_numbers = #tpu.dot_dimension_numbers<[1], [0], [0], [1], [0, 0, 1, 1], [], []>} : vector<16x128xf32>, vector<128x128xf32>, vector<16x128xf32> -> vector<16x128xf32>
    %8 = vector.broadcast %3 : vector<1x128xf32> to vector<16x128xf32>
    %9 = arith.addf %7, %8 : vector<16x128xf32>
    %cst_9 = arith.constant 0.000000e+00 : f32
    %10 = vector.broadcast %cst_9 : f32 to vector<16x128xf32>
    %11 = arith.maximumf %9, %10 : vector<16x128xf32>
    %12 = vector.shape_cast %11 : vector<16x128xf32> to vector<2x8x128xf32>
    %cst_10 = arith.constant dense<0.000000e+00> : vector<2x128xf32>
    %13 = vector.multi_reduction <add>, %12, %cst_10 [1] : vector<2x8x128xf32> to vector<2x128xf32>
    %cst_11 = arith.constant 1.250000e-01 : f32
    %14 = vector.broadcast %cst_11 : f32 to vector<2x128xf32>
    %15 = arith.mulf %13, %14 : vector<2x128xf32>
    %cst_12 = arith.constant dense<0.000000e+00> : vector<2x128xf32>
    %16 = tpu.matmul %15, %1, %cst_12 {dimension_numbers = #tpu.dot_dimension_numbers<[1], [0], [0], [1], [0, 0, 1, 1], [], []>} : vector<2x128xf32>, vector<128x128xf32>, vector<2x128xf32> -> vector<2x128xf32>
    %17 = vector.broadcast %4 : vector<1x128xf32> to vector<2x128xf32>
    %18 = arith.addf %16, %17 : vector<2x128xf32>
    %c0_13 = arith.constant 0 : index
    %c0_14 = arith.constant 0 : index
    %19 = vector.load %arg3[%c0_13, %c0_14] : memref<2x300xf32, #tpu.memory_space<vmem>>, vector<2x300xf32>
    %c0_15 = arith.constant 0 : index
    %c0_16 = arith.constant 0 : index
    %20 = vector.load %arg4[%c0_15, %c0_16] : memref<2x300xf32, #tpu.memory_space<vmem>>, vector<2x300xf32>
    %21 = tpu.concatenate %19, %20 in 0 : vector<2x300xf32>, vector<2x300xf32> -> vector<4x300xf32>
    %cst_17 = arith.constant dense<0.000000e+00> : vector<4x128xf32>
    %22 = tpu.matmul %21, %2, %cst_17 {dimension_numbers = #tpu.dot_dimension_numbers<[1], [0], [0], [1], [0, 0, 1, 1], [], []>} : vector<4x300xf32>, vector<300x128xf32>, vector<4x128xf32> -> vector<4x128xf32>
    %23 = vector.broadcast %5 : vector<1x128xf32> to vector<4x128xf32>
    %24 = arith.addf %22, %23 : vector<4x128xf32>
    %cst_18 = arith.constant 0.000000e+00 : f32
    %25 = vector.broadcast %cst_18 : f32 to vector<2x128xf32>
    %26 = tpu.concatenate %18, %24, %25 in 0 : vector<2x128xf32>, vector<4x128xf32>, vector<2x128xf32> -> vector<8x128xf32>
    %c0_19 = arith.constant 0 : index
    %c0_20 = arith.constant 0 : index
    %27 = vector.load %arg5[%c0_19, %c0_20] : memref<8x128xf32, #tpu.memory_space<vmem>>, vector<8x128xf32>
    tpu.vector_store %arg5[%c0_19, %c0_20], %26 {strides = array<i32>} : memref<8x128xf32, #tpu.memory_space<vmem>>, vector<8x128xf32>,
    return
  }
}

</mosaic_0001>

<llo_original>
// kernel: emb_model_forward.1
$region0: #{emb_model_forward.1}
  #allocation0 [shape = 'u32[]', space=smem, size = 0x4, offset = 0x4, fixed_abs, tag = 'smem constant byte address 0x4 - core index']
  #allocation1 [shape = 'u32[72,128]{1,0:T(1,128)}', space=vmem, size = 0x9000, scoped, tag = 'internal scratch']
  %s0 = inlined_call_operand.vmem [shape: f32[16,128], index: 0, kind: input, shape index: {}]
  %s1 = inlined_call_operand.hbm [shape: f32[556,128], index: 1, kind: input, shape index: {}]
  %s2 = inlined_call_operand.vmem [shape: f32[3,128], index: 2, kind: input, shape index: {}]
  %s3 = inlined_call_operand.vmem [shape: f32[2,300], index: 3, kind: input, shape index: {}]
  %s4 = inlined_call_operand.vmem [shape: f32[2,300], index: 4, kind: input, shape index: {}]
  %s5 = inlined_call_operand.vmem [shape: f32[8,128], index: 5, kind: output, shape index: {}]
  %s6 = sld [smem:[#allocation0]]
  $region34: #{emb_model_forward.1} parent=0
    _
  %s8 = ssub.s32 1, %s6
  %s9 = scalar_select 0, %s8, %s6
  $region1: #{emb_model_forward.1} parent=0
    #allocation2 [shape = 'u8[286720]{0}', space=vmem, size = 0x46000, scoped, tag = 'input window, operand 1, single buffered']
    #allocation3 [shape = 's32[1]{0}', space=sflag, size = 0x4, scoped, tag = 'scoped memory for emb_model_forward.1']
    %10 = vsyncpa [#allocation3], 0
    // Predicated region
    $region2: #{emb_model_forward.1} parent=1 // pred_check
      _
    $region3: #{emb_model_forward.1} parent=1 // pred_check_branch
      %12 = sbr.rel (0) target = $region5
    $region4: #{emb_model_forward.1} parent=1 // pred_region
      _
    $region5: #{emb_model_forward.1} parent=1 // pred_fallthru
      _
    // Predicated region
    $region6: #{emb_model_forward.1} parent=1 // pred_check
      _
    $region7: #{emb_model_forward.1} parent=1 // pred_check_branch
      %14 = sbr.rel (0) target = $region9
    $region8: #{emb_model_forward.1} parent=1 // pred_region
      %16 = vsyncadd [#allocation3], 0
      %s17 = sshll.u32 %s1, 4
      %s18 = int_to_ptr.hbm [resolvable:$true] %s17
      %s19 = sshll.u32 [#allocation2], 4
      %s20 = int_to_ptr.vmem [resolvable:$true] %s19
      %25 = dma.hbm_to_vmem [thread:$0]  %s18, 8960, %s20, [#allocation3], 128, 128, 8
    $region9: #{emb_model_forward.1} parent=1 // pred_fallthru
      _
    // Predicated region
    $region10: #{emb_model_forward.1} parent=1 // pred_check
      _
    $region11: #{emb_model_forward.1} parent=1 // pred_check_branch
      %27 = sbr.rel (0) target = $region13
    $region12: #{emb_model_forward.1} parent=1 // pred_region
      _
    $region13: #{emb_model_forward.1} parent=1 // pred_fallthru
      _
    // Predicated region
    $region14: #{emb_model_forward.1} parent=1 // pred_check
      _
    $region15: #{emb_model_forward.1} parent=1 // pred_check_branch
      %29 = sbr.rel (0) target = $region17
    $region16: #{emb_model_forward.1} parent=1 // pred_region
      _
    $region17: #{emb_model_forward.1} parent=1 // pred_fallthru
      _
    // Predicated region
    $region18: #{emb_model_forward.1} parent=1 // pred_check
      _
    $region19: #{emb_model_forward.1} parent=1 // pred_check_branch
      %31 = sbr.rel (0) target = $region21
    $region20: #{emb_model_forward.1} parent=1 // pred_region
      _
    $region21: #{emb_model_forward.1} parent=1 // pred_fallthru
      _
    // Predicated region
    $region22: #{emb_model_forward.1} parent=1 // pred_check
      _
    $region23: #{emb_model_forward.1} parent=1 // pred_check_branch
      %33 = sbr.rel (0) target = $region25
    $region24: #{emb_model_forward.1} parent=1 // pred_region
      %35 = dma.done [#allocation3], 8960
    $region25: #{emb_model_forward.1} parent=1 // pred_fallthru
      _
    %v36 = vld [vmem:[#allocation2] sm:$0xff]
    %v37 = vld [vmem:[#allocation2 + $0x8] sm:$0xff]
    %v38 = vld [vmem:[#allocation2 + $0x10] sm:$0xff]
    %v39 = vld [vmem:[#allocation2 + $0x18] sm:$0xff]
    %v40 = vld [vmem:[#allocation2 + $0x20] sm:$0xff]
    %v41 = vld [vmem:[#allocation2 + $0x28] sm:$0xff]
    %v42 = vld [vmem:[#allocation2 + $0x30] sm:$0xff]
    %v43 = vld [vmem:[#allocation2 + $0x38] sm:$0xff]
    %v44 = vld [vmem:[#allocation2 + $0x40] sm:$0xff]
    %v45 = vld [vmem:[#allocation2 + $0x48] sm:$0xff]
    %v46 = vld [vmem:[#allocation2 + $0x50] sm:$0xff]
    %v47 = vld [vmem:[#allocation2 + $0x58] sm:$0xff]
    %v48 = vld [vmem:[#allocation2 + $0x60] sm:$0xff]
    %v49 = vld [vmem:[#allocation2 + $0x68] sm:$0xff]
    %v50 = vld [vmem:[#allocation2 + $0x70] sm:$0xff]
    %v51 = vld [vmem:[#allocation2 + $0x78] sm:$0xff]
    %v52 = vld [vmem:[#allocation2 + $0x80] sm:$0xff]
    %v53 = vld [vmem:[#allocation2 + $0x88] sm:$0xff]
    %v54 = vld [vmem:[#allocation2 + $0x90] sm:$0xff]
    %v55 = vld [vmem:[#allocation2 + $0x98] sm:$0xff]
    %v56 = vld [vmem:[#allocation2 + $0xa0] sm:$0xff]
    %v57 = vld [vmem:[#allocation2 + $0xa8] sm:$0xff]
    %v58 = vld [vmem:[#allocation2 + $0xb0] sm:$0xff]
    %v59 = vld [vmem:[#allocation2 + $0xb8] sm:$0xff]
    %v60 = vld [vmem:[#allocation2 + $0xc0] sm:$0xff]
    %v61 = vld [vmem:[#allocation2 + $0xc8] sm:$0xff]
    %v62 = vld [vmem:[#allocation2 + $0xd0] sm:$0xff]
    %v63 = vld [vmem:[#allocation2 + $0xd8] sm:$0xff]
    %v64 = vld [vmem:[#allocation2 + $0xe0] sm:$0xff]
    %v65 = vld [vmem:[#allocation2 + $0xe8] sm:$0xff]
    %v66 = vld [vmem:[#allocation2 + $0xf0] sm:$0xff]
    %v67 = vld [vmem:[#allocation2 + $0xf8] sm:$0xff]
    %v68 = vld [vmem:[#allocation2 + $0x100] sm:$0xff]
    %v69 = vld [vmem:[#allocation2 + $0x108] sm:$0xff]
    %v70 = vld [vmem:[#allocation2 + $0x110] sm:$0xff]
    %v71 = vld [vmem:[#allocation2 + $0x118] sm:$0xff]
    %v72 = vld [vmem:[#allocation2 + $0x120] sm:$0xff]
    %v73 = vld [vmem:[#allocation2 + $0x128] sm:$0xff]
    %v74 = vld [vmem:[#allocation2 + $0x130] sm:$0xff]
    %v75 = vld [vmem:[#allocation2 + $0x138] sm:$0xff]
    %v76 = vld [vmem:[#allocation2 + $0x140] sm:$0xff]
    %v77 = vld [vmem:[#allocation2 + $0x148] sm:$0xff]
    %v78 = vld [vmem:[#allocation2 + $0x150] sm:$0xff]
    %v79 = vld [vmem:[#allocation2 + $0x158] sm:$0xff]
    %v80 = vld [vmem:[#allocation2 + $0x160] sm:$0xff]
    %v81 = vld [vmem:[#allocation2 + $0x168] sm:$0xff]
    %v82 = vld [vmem:[#allocation2 + $0x170] sm:$0xff]
    %v83 = vld [vmem:[#allocation2 + $0x178] sm:$0xff]
    %v84 = vld [vmem:[#allocation2 + $0x180] sm:$0xff]
    %v85 = vld [vmem:[#allocation2 + $0x188] sm:$0xff]
    %v86 = vld [vmem:[#allocation2 + $0x190] sm:$0xff]
    %v87 = vld [vmem:[#allocation2 + $0x198] sm:$0xff]
    %v88 = vld [vmem:[#allocation2 + $0x1a0] sm:$0xff]
    %v89 = vld [vmem:[#allocation2 + $0x1a8] sm:$0xff]
    %v90 = vld [vmem:[#allocation2 + $0x1b0] sm:$0xff]
    %v91 = vld [vmem:[#allocation2 + $0x1b8] sm:$0xff]
    %v92 = vld [vmem:[#allocation2 + $0x1c0] sm:$0xff]
    %v93 = vld [vmem:[#allocation2 + $0x1c8] sm:$0xff]
    %v94 = vld [vmem:[#allocation2 + $0x1d0] sm:$0xff]
    %v95 = vld [vmem:[#allocation2 + $0x1d8] sm:$0xff]
    %v96 = vld [vmem:[#allocation2 + $0x1e0] sm:$0xff]
    %v97 = vld [vmem:[#allocation2 + $0x1e8] sm:$0xff]
    %v98 = vld [vmem:[#allocation2 + $0x1f0] sm:$0xff]
    %v99 = vld [vmem:[#allocation2 + $0x1f8] sm:$0xff]
    %v100 = vld [vmem:[#allocation2 + $0x200] sm:$0xff]
    %v101 = vld [vmem:[#allocation2 + $0x208] sm:$0xff]
    %v102 = vld [vmem:[#allocation2 + $0x210] sm:$0xff]
    %v103 = vld [vmem:[#allocation2 + $0x218] sm:$0xff]
    %v104 = vld [vmem:[#allocation2 + $0x220] sm:$0xff]
    %v105 = vld [vmem:[#allocation2 + $0x228] sm:$0xf]
    %v106 = vld [vmem:[%s2] sm:$0x1]
    %v107 = vld [vmem:[%s2 + $0x1] sm:$0x1]
    %v108 = vld [vmem:[%s2 + $0x2] sm:$0x1]
    %v109 = vld [vmem:[%s0] sm:$0xff]
    %v110 = vld [vmem:[%s0 + $0x8] sm:$0xff]
    %v111 = vperm.slane %v106, 0
    %112 = vmatpush.msra.mxu0 %v51
    %113 = vmatpush.msra.mxu0 %v50
    %114 = vmatpush.msra.mxu0 %v49
    %115 = vmatpush.msra.mxu0 %v48
    %116 = vmatpush.msra.mxu0 %v47
    %117 = vmatpush.msra.mxu0 %v46
    %118 = vmatpush.msra.mxu0 %v45
    %119 = vmatpush.msra.mxu0 %v44
    %120 = vmatpush.msra.mxu0 %v43
    %121 = vmatpush.msra.mxu0 %v42
    %122 = vmatpush.msra.mxu0 %v41
    %123 = vmatpush.msra.mxu0 %v40
    %124 = vmatpush.msra.mxu0 %v39
    %125 = vmatpush.msra.mxu0 %v38
    %126 = vmatpush.msra.mxu0 %v37
    %127 = vmatpush.msra.mxu0 %v36
    %128 = vmatmul.f32.gmra.mxu0 %v109
    %v129 = vpop.f32.mrf.mxu0
    %v130 = vadd.f32 %v111, %v129
    %131 = vmatmul.f32.gmra.mxu0 %v110
    %v132 = vpop.f32.mrf.mxu0
    %v133 = vadd.f32 %v111, %v132
    %134 = vdwg.mxu0
    %v135 = vmax.f32 %v130, 0.0
    %v136 = vmax.f32 %v133, 0.0
    %v137 = vrot.slane %v135, 4
    %v138 = vadd.f32 %v135, %v137
    %v139 = vrot.slane %v138, 2
    %v140 = vadd.f32 %v138, %v139
    %v141 = vrot.slane %v140, 1
    %v142 = vadd.f32 %v140, %v141
    %v143 = vrot.slane %v136, 4
    %v144 = vadd.f32 %v136, %v143
    %v145 = vrot.slane %v144, 2
    %v146 = vadd.f32 %v144, %v145
    %v147 = vrot.slane %v146, 1
    %v148 = vadd.f32 %v146, %v147
    %v149 = vmul.f32 %v142, 0.125
    %v150 = vmul.f32 %v148, 0.125
    %v151 = vperm.slane %v107, 0
    %vm154 = vcmask 1041409
    %v155 = vsel %vm154, %v150, %v149
    %157 = vmatpush.msra.mxu0 %v67
    %158 = vmatpush.msra.mxu0 %v66
    %159 = vmatpush.msra.mxu0 %v65
    %160 = vmatpush.msra.mxu0 %v64
    %161 = vmatpush.msra.mxu0 %v63
    %162 = vmatpush.msra.mxu0 %v62
    %163 = vmatpush.msra.mxu0 %v61
    %164 = vmatpush.msra.mxu0 %v60
    %165 = vmatpush.msra.mxu0 %v59
    %166 = vmatpush.msra.mxu0 %v58
    %167 = vmatpush.msra.mxu0 %v57
    %168 = vmatpush.msra.mxu0 %v56
    %169 = vmatpush.msra.mxu0 %v55
    %170 = vmatpush.msra.mxu0 %v54
    %171 = vmatpush.msra.mxu0 %v53
    %172 = vmatpush.msra.mxu0 %v52
    %173 = vmatmul.f32.gmra.mxu0 %v155
    %v174 = vpop.f32.mrf.mxu0
    %v175 = vadd.f32 %v151, %v174
    %176 = vdwg.mxu0
    %v177 = vld [vmem:[%s3] sm:$0x3f]
    %v178 = vld [vmem:[%s4] sm:$0x3f]
    %180 = vst [vmem:[#allocation1] ss:$4 sm:$0xff] %v177
    %v181 = vld.sshfl [vmem:[#allocation1] sm:$0xff pattern:$0x73625140]
    %v182 = vld.sshfl [vmem:[#allocation1 + $0x8] sm:$0xff pattern:$0x73625140]
    %v183 = vld.sshfl [vmem:[#allocation1 + $0x10] sm:$0xff pattern:$0x73625140]
    %s188 = scalar_lea.vmem [#allocation1], 1
    %189 = vst [vmem:[%s188] ss:$4 sm:$0xff] %v178
    %v190 = vld.sshfl [vmem:[#allocation1] sm:$0xff pattern:$0x73625140]
    %v191 = vld.sshfl [vmem:[#allocation1 + $0x8] sm:$0xff pattern:$0x73625140]
    %v192 = vld.sshfl [vmem:[#allocation1 + $0x10] sm:$0xff pattern:$0x73625140]
    %vm196 = vcmask 1041408
    %v197 = vsel %vm196, %v181, %v190
    %v198 = vsel %vm196, %v182, %v191
    %v199 = vsel %vm196, %v183, %v192
    %v200 = vperm.slane %v108, 0
    %vm201 = vcmask 359424
    %v203 = vsel %vm201, %v199, 0
    %vm205 = vcmask 1043456
    %v207 = vsel %vm205, %v105, 0
    %209 = vmatpush.msra.mxu0 %v83
    %210 = vmatpush.msra.mxu0 %v82
    %211 = vmatpush.msra.mxu0 %v81
    %212 = vmatpush.msra.mxu0 %v80
    %213 = vmatpush.msra.mxu0 %v79
    %214 = vmatpush.msra.mxu0 %v78
    %215 = vmatpush.msra.mxu0 %v77
    %216 = vmatpush.msra.mxu0 %v76
    %217 = vmatpush.msra.mxu0 %v75
    %218 = vmatpush.msra.mxu0 %v74
    %219 = vmatpush.msra.mxu0 %v73
    %220 = vmatpush.msra.mxu0 %v72
    %221 = vmatpush.msra.mxu0 %v71
    %222 = vmatpush.msra.mxu0 %v70
    %223 = vmatpush.msra.mxu0 %v69
    %224 = vmatpush.msra.mxu0 %v68
    %225 = vmatmul.f32.gmra.mxu0 %v197
    %v226 = vpop.f32.mrf.mxu0
    %v227 = vadd.f32 %v200, %v226
    %228 = vdwg.mxu0
    %229 = vmatpush.msra.mxu0 %v99
    %230 = vmatpush.msra.mxu0 %v98
    %231 = vmatpush.msra.mxu0 %v97
    %232 = vmatpush.msra.mxu0 %v96
    %233 = vmatpush.msra.mxu0 %v95
    %234 = vmatpush.msra.mxu0 %v94
    %235 = vmatpush.msra.mxu0 %v93
    %236 = vmatpush.msra.mxu0 %v92
    %237 = vmatpush.msra.mxu0 %v91
    %238 = vmatpush.msra.mxu0 %v90
    %239 = vmatpush.msra.mxu0 %v89
    %240 = vmatpush.msra.mxu0 %v88
    %241 = vmatpush.msra.mxu0 %v87
    %242 = vmatpush.msra.mxu0 %v86
    %243 = vmatpush.msra.mxu0 %v85
    %244 = vmatpush.msra.mxu0 %v84
    %245 = vmatmul.f32.gmra.mxu0 %v198
    %v246 = vpop.f32.mrf.mxu0
    %v247 = vadd.f32 %v227, %v246
    %248 = vdwg.mxu0
    %249 = vmatpush.msra.mxu0 0.0
    %250 = vmatpush.msra.mxu0 0.0
    %251 = vmatpush.msra.mxu0 0.0
    %252 = vmatpush.msra.mxu0 0.0
    %253 = vmatpush.msra.mxu0 0.0
    %254 = vmatpush.msra.mxu0 0.0
    %255 = vmatpush.msra.mxu0 0.0
    %256 = vmatpush.msra.mxu0 0.0
    %257 = vmatpush.msra.mxu0 0.0
    %258 = vmatpush.msra.mxu0 0.0
    %259 = vmatpush.msra.mxu0 %v207
    %260 = vmatpush.msra.mxu0 %v104
    %261 = vmatpush.msra.mxu0 %v103
    %262 = vmatpush.msra.mxu0 %v102
    %263 = vmatpush.msra.mxu0 %v101
    %264 = vmatpush.msra.mxu0 %v100
    %265 = vmatmul.f32.gmra.mxu0 %v203
    %v266 = vpop.f32.mrf.mxu0
    %v267 = vadd.f32 %v247, %v266
    %268 = vdwg.mxu0
    %v270 = vrot.slane %v267, 6
    %v272 = vsel %vm196, %v175, %v270
    %vm273 = vcmask 1045504
    %v274 = vsel %vm273, %v272, 0.0
    %275 = vst [vmem:[%s5] sm:$0xff] %v274
    // Predicated region
    $region26: #{emb_model_forward.1} parent=1 // pred_check
      _
    $region27: #{emb_model_forward.1} parent=1 // pred_check_branch
      %277 = sbr.rel (0) target = $region29
    $region28: #{emb_model_forward.1} parent=1 // pred_region
      _
    $region29: #{emb_model_forward.1} parent=1 // pred_fallthru
      _
    // Predicated region
    $region30: #{emb_model_forward.1} parent=1 // pred_check
      _
    $region31: #{emb_model_forward.1} parent=1 // pred_check_branch
      %279 = sbr.rel (0) target = $region33
    $region32: #{emb_model_forward.1} parent=1 // pred_region
      _
    $region33: #{emb_model_forward.1} parent=1 // pred_fallthru
      _
    %280 = vsyncpa [#allocation3], 1

</llo_original>
